<compile_context>
chip_gen: v5e
topology: v5e:2x2
jax: 0.10.0
libtpu: 0.0.40
codegen_flags: <defaults>
</compile_context>

<pallas_src>
import numpy as np
import jax
import jax.numpy as jnp
from jax.experimental import pallas as pl

# ----- static configuration (stands in for GP / *_paras.npy) -----
B = 4                     # batch of CK_input candidate sets, fused into one kernel step
N_WG = 8                  # N waveguides
MODES = 2                 # GP.modes
KNN = 2                   # GP.Knn
NODE_K = 64               # real hidden width of the knn MLP (node_k)
NODE_PAD = 128            # lane-padded hidden width (zero-padded weights; bit-exact)
IN_FEATS = 3              # (hi, hj, dis)
IN_PAD = 8                # sublane-padded feature dim for the first matmul
NSLICE = 2 * (KNN + 1)    # neighbours per waveguide
M = N_WG * NSLICE         # rows of K_stripped per candidate set (= 48)
CH = MODES * MODES        # MLP output channels (= 4)
KD = MODES * N_WG         # dense K is [KD, KD]  (= 16)
HEAD = MODES * KD         # useful head lanes: (mi, c, mj) layout (= 32)
HEAD_PAD = 128            # lane-padded head width (cols >= HEAD are zero -> lane-dense stores)


def gen_coo_sparse(N, Knn):
    # TODO(synk): the real gen_coo_sparse lives in Meta_SCMT utils; this clamped-neighbour
    # stand-in is structurally faithful and exercises the duplicate-summing (coalesce) path.
    rows, cols = [], []
    for i in range(N):
        for d in range(2 * (Knn + 1)):
            j = min(max(i - Knn + d, 0), N - 1)
            rows.append(i)
            cols.append(j)
    return np.stack([np.array(rows), np.array(cols)]).astype(np.int32)   # [2, M]


# --------------------------- Pallas kernel (single step, batch fused) ---------------------------
def gen_k_kernel(x_ref, w0_ref, b0_ref, w1a_ref, b1a_ref, w1b_ref, b1b_ref,
                 w2t_ref, b2t_ref, colmask_ref, rowscat_ref, out_ref):
    f32 = jnp.float32
    x = x_ref[...]                                                           # [B*M, IN_PAD]
    # knn MLP: input layer + 2 hidden layers, all lane-dense (128-wide) matmuls over B*M rows.
    h = jnp.maximum(jnp.dot(x, w0_ref[...], preferred_element_type=f32) + b0_ref[...], 0.0)
    h = jnp.maximum(jnp.dot(h, w1a_ref[...], preferred_element_type=f32) + b1a_ref[...], 0.0)
    h = jnp.maximum(jnp.dot(h, w1b_ref[...], preferred_element_type=f32) + b1b_ref[...], 0.0)
    # Fused head matmul: lane j = mi*KD + c*MODES + mj carries channel (mi,mj) replicated
    # over column block c (lanes >= HEAD are zero). colmask zeroes entries whose c != coo1[k],
    # i.e. the COO column selection; no per-channel sparse assembly needed.
    mid = (jnp.dot(h, w2t_ref[...], preferred_element_type=f32) + b2t_ref[...]) * colmask_ref[...]
    # Single scatter matmul (block-diagonal over batch): sums duplicate (r, c) COO entries
    # (== coalesce) and lays the result out lane-dense:
    #   out[b*N + r, mi*KD + c*MODES + mj] = K_dense[b, r*MODES+mi, c*MODES+mj]
    out_ref[...] = jnp.dot(rowscat_ref[...], mid, preferred_element_type=f32)


# --------------------------- host-side helpers ---------------------------
def make_params(key):
    ks = jax.random.split(key, 8)
    f = jnp.float32
    rnd = lambda k, shape, s: jax.random.normal(k, shape, f) * s
    return {
        'W0': rnd(ks[0], (IN_FEATS, NODE_K), 0.5),  'b0': rnd(ks[1], (1, NODE_K), 0.2),
        'W1a': rnd(ks[2], (NODE_K, NODE_K), 0.15),  'b1a': rnd(ks[3], (1, NODE_K), 0.1),
        'W1b': rnd(ks[4], (NODE_K, NODE_K), 0.15),  'b1b': rnd(ks[5], (1, NODE_K), 0.1),
        'W2': rnd(ks[6], (NODE_K, CH), 0.2),        'b2': rnd(ks[7], (1, CH), 0.1),
    }


def _pad2(w, r, c):
    out = np.zeros((r, c), np.float32)
    w = np.asarray(w)
    out[:w.shape[0], :w.shape[1]] = w
    return out


def _build_constants(coo, params, batch):
    """Precompute (once) the padded weights and dense 0/1 operands that replace the
    per-channel sparse COO assembly. Only valid for this exact (coo, params, batch)."""
    coo = np.asarray(coo)
    assert coo.shape == (2, M) and coo.min() >= 0 and coo.max() < N_WG, \
        "cached scatter constants do not match this coo"

    W0 = _pad2(params['W0'], IN_PAD, NODE_PAD);    b0 = _pad2(params['b0'], 1, NODE_PAD)
    W1a = _pad2(params['W1a'], NODE_PAD, NODE_PAD); b1a = _pad2(params['b1a'], 1, NODE_PAD)
    W1b = _pad2(params['W1b'], NODE_PAD, NODE_PAD); b1b = _pad2(params['b1b'], 1, NODE_PAD)
    W2 = _pad2(params['W2'], NODE_PAD, CH)
    b2 = np.asarray(params['b2'], np.float32)

    # Head weights/bias replicated over the column block c: lane layout (mi, c, mj), zero-padded.
    W2T = np.zeros((NODE_PAD, HEAD_PAD), np.float32)
    b2T = np.zeros((1, HEAD_PAD), np.float32)
    for mi in range(MODES):
        for c in range(N_WG):
            for mj in range(MODES):
                j = mi * KD + c * MODES + mj
                W2T[:, j] = W2[:, mi * MODES + mj]
                b2T[0, j] = b2[0, mi * MODES + mj]

    # colmask[k, mi*KD + c*MODES + mj] = 1[coo1[k] == c]; tiled over the fused batch rows.
    colmask_1 = np.zeros((M, HEAD_PAD), np.float32)
    for k in range(M):
        c = int(coo[1, k])
        for mi in range(MODES):
            colmask_1[k, mi * KD + c * MODES: mi * KD + (c + 1) * MODES] = 1.0
    colmask = np.tile(colmask_1, (batch, 1))                          # [B*M, HEAD_PAD]

    # Block-diagonal row scatter: rowscat[b*N + r, b*M + k] = 1[coo0[k] == r].
    rowscat = np.zeros((batch * N_WG, batch * M), np.float32)
    for k in range(M):
        r = int(coo[0, k])
        for b in range(batch):
            rowscat[b * N_WG + r, b * M + k] = 1.0

    return tuple(jnp.asarray(a) for a in
                 (W0, b0, W1a, b1a, W1b, b1b, W2T, b2T, colmask, rowscat))


def make_gen_k(coo, params, batch):
    """Build the fused gen_K forward once; constants are uploaded a single time and reused."""
    consts = _build_constants(coo, params, batch)
    out_shape = jax.ShapeDtypeStruct((batch * N_WG, HEAD_PAD), jnp.float32)

    def full_spec(a):
        nd = a.ndim
        return pl.BlockSpec(a.shape, lambda i, _nd=nd: (0,) * _nd)

    def call_kernel(x, *cs):
        in_specs = [full_spec(x)] + [full_spec(c) for c in cs]
        return pl.pallas_call(
            gen_k_kernel,
            out_shape=out_shape,
            grid=(1,),                                       # single fused step, no per-batch grid
            in_specs=in_specs,
            out_specs=pl.BlockSpec((batch * N_WG, HEAD_PAD), lambda i: (0, 0)),
        )(x, *cs)

    @jax.jit
    def forward(CK_inputs):
        # CK_inputs: [B, N, 2*(Knn+1), 3] -> K_dense: [B, modes*N, modes*N] (float32)
        assert CK_inputs.shape == (batch, N_WG, NSLICE, IN_FEATS), \
            "batch/shape must match the constants this forward was built for"
        x = CK_inputs.reshape(batch * M, IN_FEATS).astype(jnp.float32)
        x = jnp.pad(x, ((0, 0), (0, IN_PAD - IN_FEATS)))              # feature dim 3 -> 8
        slab = call_kernel(x, *consts)                                # [B*N, HEAD_PAD]
        # lane layout (mi, c, mj) + row layout (b, r) -> pure reshape, no transpose needed
        return slab[:, :HEAD].reshape(batch, N_WG, MODES, KD).reshape(batch, KD, KD)

    return forward


# --------------------------- pure-JAX reference ---------------------------
def reference_forward(CK_inputs, coo, p):
    """Mirror of the torch gen_K.forward (sparse scatter + coalesce + to_dense)."""
    hi = jax.lax.Precision.HIGHEST
    bsz = CK_inputs.shape[0]
    x = CK_inputs.reshape(bsz, M, IN_FEATS).astype(jnp.float32)
    dot = lambda a, b: jnp.einsum('bmi,io->bmo', a, b, precision=hi)
    h = jnp.maximum(dot(x, p['W0']) + p['b0'], 0.0)
    h = jnp.maximum(dot(h, p['W1a']) + p['b1a'], 0.0)
    h = jnp.maximum(dot(h, p['W1b']) + p['b1b'], 0.0)
    ks = dot(h, p['W2']) + p['b2']                                     # [B, M, modes**2]
    rows = jnp.asarray(coo[0], jnp.int32)
    cols = jnp.asarray(coo[1], jnp.int32)
    K = jnp.zeros((bsz, KD, KD), jnp.float32)
    for mi in range(MODES):
        for mj in range(MODES):
            ch = mi * MODES + mj
            K = K.at[:, rows * MODES + mi, cols * MODES + mj].add(ks[:, :, ch])
    return K


if __name__ == "__main__":
    key = jax.random.PRNGKey(0)
    k_x, k_p = jax.random.split(key)
    CK_inputs = jax.random.normal(k_x, (B, N_WG, NSLICE, IN_FEATS), jnp.float32)
    params = make_params(k_p)
    coo = gen_coo_sparse(N_WG, KNN)

    gen_k_fwd = make_gen_k(coo, params, batch=B)      # constants built & uploaded once
    k_dense = jax.block_until_ready(gen_k_fwd(CK_inputs))
    assert k_dense.shape == (B, KD, KD) and k_dense.dtype == jnp.float32

    k_ref = jax.block_until_ready(reference_forward(CK_inputs, coo, params))
    # tolerance documents DEFAULT MXU matmul precision in-kernel vs HIGHEST-precision reference
    np.testing.assert_allclose(np.asarray(k_dense), np.asarray(k_ref), rtol=2e-2, atol=5e-3)

    print("KERNEL_OK")
</pallas_src>

<mosaic_0001>
module attributes {stable_mosaic.version = 11 : i64} {
  func.func @gen_k_kernel(%arg0: i32, %arg1: memref<192x8xf32, #tpu.memory_space<vmem>>, %arg2: memref<8x128xf32, #tpu.memory_space<vmem>>, %arg3: memref<1x128xf32, #tpu.memory_space<vmem>>, %arg4: memref<128x128xf32, #tpu.memory_space<vmem>>, %arg5: memref<1x128xf32, #tpu.memory_space<vmem>>, %arg6: memref<128x128xf32, #tpu.memory_space<vmem>>, %arg7: memref<1x128xf32, #tpu.memory_space<vmem>>, %arg8: memref<128x128xf32, #tpu.memory_space<vmem>>, %arg9: memref<1x128xf32, #tpu.memory_space<vmem>>, %arg10: memref<192x128xf32, #tpu.memory_space<vmem>>, %arg11: memref<32x192xf32, #tpu.memory_space<vmem>>, %arg12: memref<32x128xf32, #tpu.memory_space<vmem>>) attributes {dimension_semantics = [#tpu.dimension_semantics<arbitrary>], iteration_bounds = array<i64: 1>, scalar_prefetch = 0 : i64, scratch_operands = 0 : i64, tpu.core_type = #tpu.core_type<tc>, window_params = [{pipeline_mode = #tpu.pipeline_mode<synchronous>, transform_indices = @transform_0, window_bounds = array<i64: 192, 8>}, {pipeline_mode = #tpu.pipeline_mode<synchronous>, transform_indices = @transform_1, window_bounds = array<i64: 8, 128>}, {pipeline_mode = #tpu.pipeline_mode<synchronous>, transform_indices = @transform_2, window_bounds = array<i64: 1, 128>}, {pipeline_mode = #tpu.pipeline_mode<synchronous>, transform_indices = @transform_3, window_bounds = array<i64: 128, 128>}, {pipeline_mode = #tpu.pipeline_mode<synchronous>, transform_indices = @transform_4, window_bounds = array<i64: 1, 128>}, {pipeline_mode = #tpu.pipeline_mode<synchronous>, transform_indices = @transform_5, window_bounds = array<i64: 128, 128>}, {pipeline_mode = #tpu.pipeline_mode<synchronous>, transform_indices = @transform_6, window_bounds = array<i64: 1, 128>}, {pipeline_mode = #tpu.pipeline_mode<synchronous>, transform_indices = @transform_7, window_bounds = array<i64: 128, 128>}, {pipeline_mode = #tpu.pipeline_mode<synchronous>, transform_indices = @transform_8, window_bounds = array<i64: 1, 128>}, {pipeline_mode = #tpu.pipeline_mode<synchronous>, transform_indices = @transform_9, window_bounds = array<i64: 192, 128>}, {pipeline_mode = #tpu.pipeline_mode<synchronous>, transform_indices = @transform_10, window_bounds = array<i64: 32, 192>}, {pipeline_mode = #tpu.pipeline_mode<synchronous>, transform_indices = @transform_11, window_bounds = array<i64: 32, 128>}]} {
    %c0 = arith.constant 0 : index
    %c0_0 = arith.constant 0 : index
    %0 = vector.load %arg1[%c0, %c0_0] : memref<192x8xf32, #tpu.memory_space<vmem>>, vector<192x8xf32>
    %c0_1 = arith.constant 0 : index
    %c0_2 = arith.constant 0 : index
    %1 = vector.load %arg2[%c0_1, %c0_2] : memref<8x128xf32, #tpu.memory_space<vmem>>, vector<8x128xf32>
    %cst = arith.constant dense<0.000000e+00> : vector<192x128xf32>
    %2 = tpu.matmul %0, %1, %cst {dimension_numbers = #tpu.dot_dimension_numbers<[1], [0], [0], [1], [0, 0, 1, 1], [], []>} : vector<192x8xf32>, vector<8x128xf32>, vector<192x128xf32> -> vector<192x128xf32>
    %c0_3 = arith.constant 0 : index
    %c0_4 = arith.constant 0 : index
    %3 = vector.load %arg3[%c0_3, %c0_4] : memref<1x128xf32, #tpu.memory_space<vmem>>, vector<1x128xf32>
    %4 = vector.broadcast %3 : vector<1x128xf32> to vector<192x128xf32>
    %5 = arith.addf %2, %4 : vector<192x128xf32>
    %cst_5 = arith.constant 0.000000e+00 : f32
    %6 = vector.broadcast %cst_5 : f32 to vector<192x128xf32>
    %7 = arith.maximumf %5, %6 : vector<192x128xf32>
    %c0_6 = arith.constant 0 : index
    %c0_7 = arith.constant 0 : index
    %8 = vector.load %arg4[%c0_6, %c0_7] : memref<128x128xf32, #tpu.memory_space<vmem>>, vector<128x128xf32>
    %cst_8 = arith.constant dense<0.000000e+00> : vector<192x128xf32>
    %9 = tpu.matmul %7, %8, %cst_8 {dimension_numbers = #tpu.dot_dimension_numbers<[1], [0], [0], [1], [0, 0, 1, 1], [], []>} : vector<192x128xf32>, vector<128x128xf32>, vector<192x128xf32> -> vector<192x128xf32>
    %c0_9 = arith.constant 0 : index
    %c0_10 = arith.constant 0 : index
    %10 = vector.load %arg5[%c0_9, %c0_10] : memref<1x128xf32, #tpu.memory_space<vmem>>, vector<1x128xf32>
    %11 = vector.broadcast %10 : vector<1x128xf32> to vector<192x128xf32>
    %12 = arith.addf %9, %11 : vector<192x128xf32>
    %cst_11 = arith.constant 0.000000e+00 : f32
    %13 = vector.broadcast %cst_11 : f32 to vector<192x128xf32>
    %14 = arith.maximumf %12, %13 : vector<192x128xf32>
    %c0_12 = arith.constant 0 : index
    %c0_13 = arith.constant 0 : index
    %15 = vector.load %arg6[%c0_12, %c0_13] : memref<128x128xf32, #tpu.memory_space<vmem>>, vector<128x128xf32>
    %cst_14 = arith.constant dense<0.000000e+00> : vector<192x128xf32>
    %16 = tpu.matmul %14, %15, %cst_14 {dimension_numbers = #tpu.dot_dimension_numbers<[1], [0], [0], [1], [0, 0, 1, 1], [], []>} : vector<192x128xf32>, vector<128x128xf32>, vector<192x128xf32> -> vector<192x128xf32>
    %c0_15 = arith.constant 0 : index
    %c0_16 = arith.constant 0 : index
    %17 = vector.load %arg7[%c0_15, %c0_16] : memref<1x128xf32, #tpu.memory_space<vmem>>, vector<1x128xf32>
    %18 = vector.broadcast %17 : vector<1x128xf32> to vector<192x128xf32>
    %19 = arith.addf %16, %18 : vector<192x128xf32>
    %cst_17 = arith.constant 0.000000e+00 : f32
    %20 = vector.broadcast %cst_17 : f32 to vector<192x128xf32>
    %21 = arith.maximumf %19, %20 : vector<192x128xf32>
    %c0_18 = arith.constant 0 : index
    %c0_19 = arith.constant 0 : index
    %22 = vector.load %arg8[%c0_18, %c0_19] : memref<128x128xf32, #tpu.memory_space<vmem>>, vector<128x128xf32>
    %cst_20 = arith.constant dense<0.000000e+00> : vector<192x128xf32>
    %23 = tpu.matmul %21, %22, %cst_20 {dimension_numbers = #tpu.dot_dimension_numbers<[1], [0], [0], [1], [0, 0, 1, 1], [], []>} : vector<192x128xf32>, vector<128x128xf32>, vector<192x128xf32> -> vector<192x128xf32>
    %c0_21 = arith.constant 0 : index
    %c0_22 = arith.constant 0 : index
    %24 = vector.load %arg9[%c0_21, %c0_22] : memref<1x128xf32, #tpu.memory_space<vmem>>, vector<1x128xf32>
    %25 = vector.broadcast %24 : vector<1x128xf32> to vector<192x128xf32>
    %26 = arith.addf %23, %25 : vector<192x128xf32>
    %c0_23 = arith.constant 0 : index
    %c0_24 = arith.constant 0 : index
    %27 = vector.load %arg10[%c0_23, %c0_24] : memref<192x128xf32, #tpu.memory_space<vmem>>, vector<192x128xf32>
    %28 = arith.mulf %26, %27 : vector<192x128xf32>
    %c0_25 = arith.constant 0 : index
    %c0_26 = arith.constant 0 : index
    %29 = vector.load %arg11[%c0_25, %c0_26] : memref<32x192xf32, #tpu.memory_space<vmem>>, vector<32x192xf32>
    %cst_27 = arith.constant dense<0.000000e+00> : vector<32x128xf32>
    %30 = tpu.matmul %29, %28, %cst_27 {dimension_numbers = #tpu.dot_dimension_numbers<[1], [0], [0], [1], [0, 0, 1, 1], [], []>} : vector<32x192xf32>, vector<192x128xf32>, vector<32x128xf32> -> vector<32x128xf32>
    %c0_28 = arith.constant 0 : index
    %c0_29 = arith.constant 0 : index
    %31 = vector.load %arg12[%c0_28, %c0_29] : memref<32x128xf32, #tpu.memory_space<vmem>>, vector<32x128xf32>
    tpu.vector_store %arg12[%c0_28, %c0_29], %30 {strides = array<i32>} : memref<32x128xf32, #tpu.memory_space<vmem>>, vector<32x128xf32>,
    return
  }
  func.func @transform_0(%arg0: i32) -> (i32, i32) {
    %c0_i32 = arith.constant 0 : i32
    %c0_i32_0 = arith.constant 0 : i32
    %c0_i32_1 = arith.constant 0 : i32
    return %c0_i32, %c0_i32_0 : i32, i32
  }
  func.func @transform_1(%arg0: i32) -> (i32, i32) {
    %c0_i32 = arith.constant 0 : i32
    %c0_i32_0 = arith.constant 0 : i32
    %c0_i32_1 = arith.constant 0 : i32
    return %c0_i32, %c0_i32_0 : i32, i32
  }
  func.func @transform_2(%arg0: i32) -> (i32, i32) {
    %c0_i32 = arith.constant 0 : i32
    %c0_i32_0 = arith.constant 0 : i32
    %c0_i32_1 = arith.constant 0 : i32
    return %c0_i32, %c0_i32_0 : i32, i32
  }
  func.func @transform_3(%arg0: i32) -> (i32, i32) {
    %c0_i32 = arith.constant 0 : i32
    %c0_i32_0 = arith.constant 0 : i32
    %c0_i32_1 = arith.constant 0 : i32
    return %c0_i32, %c0_i32_0 : i32, i32
  }
  func.func @transform_4(%arg0: i32) -> (i32, i32) {
    %c0_i32 = arith.constant 0 : i32
    %c0_i32_0 = arith.constant 0 : i32
    %c0_i32_1 = arith.constant 0 : i32
    return %c0_i32, %c0_i32_0 : i32, i32
  }
  func.func @transform_5(%arg0: i32) -> (i32, i32) {
    %c0_i32 = arith.constant 0 : i32
    %c0_i32_0 = arith.constant 0 : i32
    %c0_i32_1 = arith.constant 0 : i32
    return %c0_i32, %c0_i32_0 : i32, i32
  }
  func.func @transform_6(%arg0: i32) -> (i32, i32) {
    %c0_i32 = arith.constant 0 : i32
    %c0_i32_0 = arith.constant 0 : i32
    %c0_i32_1 = arith.constant 0 : i32
    return %c0_i32, %c0_i32_0 : i32, i32
  }
  func.func @transform_7(%arg0: i32) -> (i32, i32) {
    %c0_i32 = arith.constant 0 : i32
    %c0_i32_0 = arith.constant 0 : i32
    %c0_i32_1 = arith.constant 0 : i32
    return %c0_i32, %c0_i32_0 : i32, i32
  }
  func.func @transform_8(%arg0: i32) -> (i32, i32) {
    %c0_i32 = arith.constant 0 : i32
    %c0_i32_0 = arith.constant 0 : i32
    %c0_i32_1 = arith.constant 0 : i32
    return %c0_i32, %c0_i32_0 : i32, i32
  }
  func.func @transform_9(%arg0: i32) -> (i32, i32) {
    %c0_i32 = arith.constant 0 : i32
    %c0_i32_0 = arith.constant 0 : i32
    %c0_i32_1 = arith.constant 0 : i32
    return %c0_i32, %c0_i32_0 : i32, i32
  }
  func.func @transform_10(%arg0: i32) -> (i32, i32) {
    %c0_i32 = arith.constant 0 : i32
    %c0_i32_0 = arith.constant 0 : i32
    %c0_i32_1 = arith.constant 0 : i32
    return %c0_i32, %c0_i32_0 : i32, i32
  }
  func.func @transform_11(%arg0: i32) -> (i32, i32) {
    %c0_i32 = arith.constant 0 : i32
    %c0_i32_0 = arith.constant 0 : i32
    %c0_i32_1 = arith.constant 0 : i32
    return %c0_i32, %c0_i32_0 : i32, i32
  }
}

</mosaic_0001>

<llo_original>
// kernel: forward.1
$region0: #{forward.1}
  #allocation0 [shape = 'u32[]', space=smem, size = 0x4, offset = 0x4, fixed_abs, tag = 'smem constant byte address 0x4 - core index']
  #allocation1 [shape = 'u32[72,128]{1,0:T(1,128)}', space=vmem, size = 0x9000, scoped, tag = 'internal scratch']
  %s0 = inlined_call_operand.vmem [shape: f32[192,8], index: 0, kind: input, shape index: {}]
  %s1 = inlined_call_operand.vmem [shape: f32[8,128], index: 1, kind: input, shape index: {}]
  %s2 = inlined_call_operand.vmem [shape: f32[1,128], index: 2, kind: input, shape index: {}]
  %s3 = inlined_call_operand.vmem [shape: f32[128,128], index: 3, kind: input, shape index: {}]
  %s4 = inlined_call_operand.vmem [shape: f32[1,128], index: 4, kind: input, shape index: {}]
  %s5 = inlined_call_operand.vmem [shape: f32[128,128], index: 5, kind: input, shape index: {}]
  %s6 = inlined_call_operand.vmem [shape: f32[1,128], index: 6, kind: input, shape index: {}]
  %s7 = inlined_call_operand.vmem [shape: f32[128,128], index: 7, kind: input, shape index: {}]
  %s8 = inlined_call_operand.vmem [shape: f32[1,128], index: 8, kind: input, shape index: {}]
  %s9 = inlined_call_operand.vmem [shape: f32[192,128], index: 9, kind: input, shape index: {}]
  %s10 = inlined_call_operand.vmem [shape: f32[32,192], index: 10, kind: input, shape index: {}]
  %s11 = inlined_call_operand.vmem [shape: f32[32,128], index: 11, kind: output, shape index: {}]
  %s12 = sld [smem:[#allocation0]]
  $region54: #{forward.1} parent=0
    _
  %s14 = ssub.s32 1, %s12
  %s15 = scalar_select 0, %s14, %s12
  // Predicated region
  $region2: #{forward.1} parent=0 // pred_check
    _
  $region3: #{forward.1} parent=0 // pred_check_branch
    %17 = sbr.rel (0) target = $region5
  $region4: #{forward.1} parent=0 // pred_region
    _
  $region5: #{forward.1} parent=0 // pred_fallthru
    _
  // Predicated region
  $region6: #{forward.1} parent=0 // pred_check
    _
  $region7: #{forward.1} parent=0 // pred_check_branch
    %19 = sbr.rel (0) target = $region9
  $region8: #{forward.1} parent=0 // pred_region
    _
  $region9: #{forward.1} parent=0 // pred_fallthru
    _
  // Predicated region
  $region10: #{forward.1} parent=0 // pred_check
    _
  $region11: #{forward.1} parent=0 // pred_check_branch
    %21 = sbr.rel (0) target = $region13
  $region12: #{forward.1} parent=0 // pred_region
    _
  $region13: #{forward.1} parent=0 // pred_fallthru
    _
  // Predicated region
  $region14: #{forward.1} parent=0 // pred_check
    _
  $region15: #{forward.1} parent=0 // pred_check_branch
    %23 = sbr.rel (0) target = $region17
  $region16: #{forward.1} parent=0 // pred_region
    _
  $region17: #{forward.1} parent=0 // pred_fallthru
    _
  // Predicated region
  $region18: #{forward.1} parent=0 // pred_check
    _
  $region19: #{forward.1} parent=0 // pred_check_branch
    %25 = sbr.rel (0) target = $region21
  $region20: #{forward.1} parent=0 // pred_region
    _
  $region21: #{forward.1} parent=0 // pred_fallthru
    _
  // Predicated region
  $region22: #{forward.1} parent=0 // pred_check
    _
  $region23: #{forward.1} parent=0 // pred_check_branch
    %27 = sbr.rel (0) target = $region25
  $region24: #{forward.1} parent=0 // pred_region
    _
  $region25: #{forward.1} parent=0 // pred_fallthru
    _
  // Predicated region
  $region26: #{forward.1} parent=0 // pred_check
    _
  $region27: #{forward.1} parent=0 // pred_check_branch
    %29 = sbr.rel (0) target = $region29
  $region28: #{forward.1} parent=0 // pred_region
    _
  $region29: #{forward.1} parent=0 // pred_fallthru
    _
  // Predicated region
  $region30: #{forward.1} parent=0 // pred_check
    _
  $region31: #{forward.1} parent=0 // pred_check_branch
    %31 = sbr.rel (0) target = $region33
  $region32: #{forward.1} parent=0 // pred_region
    _
  $region33: #{forward.1} parent=0 // pred_fallthru
    _
  // Predicated region
  $region34: #{forward.1} parent=0 // pred_check
    _
  $region35: #{forward.1} parent=0 // pred_check_branch
    %33 = sbr.rel (0) target = $region37
  $region36: #{forward.1} parent=0 // pred_region
    _
  $region37: #{forward.1} parent=0 // pred_fallthru
    _
  // Predicated region
  $region38: #{forward.1} parent=0 // pred_check
    _
  $region39: #{forward.1} parent=0 // pred_check_branch
    %35 = sbr.rel (0) target = $region41
  $region40: #{forward.1} parent=0 // pred_region
    _
  $region41: #{forward.1} parent=0 // pred_fallthru
    _
  // Predicated region
  $region42: #{forward.1} parent=0 // pred_check
    _
  $region43: #{forward.1} parent=0 // pred_check_branch
    %37 = sbr.rel (0) target = $region45
  $region44: #{forward.1} parent=0 // pred_region
    _
  $region45: #{forward.1} parent=0 // pred_fallthru
    _
  %v38 = vld [vmem:[%s0] sm:$0xff]
  %v39 = vld [vmem:[%s0 + $0x8] sm:$0xff]
  %v40 = vld [vmem:[%s0 + $0x10] sm:$0xff]
  %v41 = vld [vmem:[%s0 + $0x18] sm:$0xff]
  %v42 = vld [vmem:[%s0 + $0x20] sm:$0xff]
  %v43 = vld [vmem:[%s0 + $0x28] sm:$0xff]
  %v44 = vld [vmem:[%s0 + $0x30] sm:$0xff]
  %v45 = vld [vmem:[%s0 + $0x38] sm:$0xff]
  %v46 = vld [vmem:[%s0 + $0x40] sm:$0xff]
  %v47 = vld [vmem:[%s0 + $0x48] sm:$0xff]
  %v48 = vld [vmem:[%s0 + $0x50] sm:$0xff]
  %v49 = vld [vmem:[%s0 + $0x58] sm:$0xff]
  %v50 = vld [vmem:[%s0 + $0x60] sm:$0xff]
  %v51 = vld [vmem:[%s0 + $0x68] sm:$0xff]
  %v52 = vld [vmem:[%s0 + $0x70] sm:$0xff]
  %v53 = vld [vmem:[%s0 + $0x78] sm:$0xff]
  %v54 = vld [vmem:[%s0 + $0x80] sm:$0xff]
  %v55 = vld [vmem:[%s0 + $0x88] sm:$0xff]
  %v56 = vld [vmem:[%s0 + $0x90] sm:$0xff]
  %v57 = vld [vmem:[%s0 + $0x98] sm:$0xff]
  %v58 = vld [vmem:[%s0 + $0xa0] sm:$0xff]
  %v59 = vld [vmem:[%s0 + $0xa8] sm:$0xff]
  %v60 = vld [vmem:[%s0 + $0xb0] sm:$0xff]
  %v61 = vld [vmem:[%s0 + $0xb8] sm:$0xff]
  %v62 = vld [vmem:[%s1] sm:$0xff]
  %v63 = vld [vmem:[%s2] sm:$0x1]
  %v65 = vperm.slane %v63, 0
  %vm67 = vcmask 64512
  %v69 = vsel %vm67, %v38, 0
  %v72 = vsel %vm67, %v39, 0
  %v75 = vsel %vm67, %v40, 0
  %v78 = vsel %vm67, %v41, 0
  %v81 = vsel %vm67, %v42, 0
  %v84 = vsel %vm67, %v43, 0
  %v87 = vsel %vm67, %v44, 0
  %v90 = vsel %vm67, %v45, 0
  %v93 = vsel %vm67, %v46, 0
  %v96 = vsel %vm67, %v47, 0
  %v99 = vsel %vm67, %v48, 0
  %v102 = vsel %vm67, %v49, 0
  %v105 = vsel %vm67, %v50, 0
  %v108 = vsel %vm67, %v51, 0
  %v111 = vsel %vm67, %v52, 0
  %v114 = vsel %vm67, %v53, 0
  %v117 = vsel %vm67, %v54, 0
  %v120 = vsel %vm67, %v55, 0
  %v123 = vsel %vm67, %v56, 0
  %v126 = vsel %vm67, %v57, 0
  %v129 = vsel %vm67, %v58, 0
  %v132 = vsel %vm67, %v59, 0
  %v135 = vsel %vm67, %v60, 0
  %v138 = vsel %vm67, %v61, 0
  %140 = vmatpush.msra.mxu0 0.0
  %141 = vmatpush.msra.mxu0 0.0
  %142 = vmatpush.msra.mxu0 0.0
  %143 = vmatpush.msra.mxu0 0.0
  %144 = vmatpush.msra.mxu0 0.0
  %145 = vmatpush.msra.mxu0 0.0
  %146 = vmatpush.msra.mxu0 0.0
  %147 = vmatpush.msra.mxu0 0.0
  %148 = vmatpush.msra.mxu0 0.0
  %149 = vmatpush.msra.mxu0 0.0
  %150 = vmatpush.msra.mxu0 0.0
  %151 = vmatpush.msra.mxu0 0.0
  %152 = vmatpush.msra.mxu0 0.0
  %153 = vmatpush.msra.mxu0 0.0
  %154 = vmatpush.msra.mxu0 0.0
  %155 = vmatpush.msra.mxu0 %v62
  %156 = vmatmul.f32.gmra.mxu0 %v69
  %v157 = vpop.f32.mrf.mxu0
  %v158 = vadd.f32 %v65, %v157
  %159 = vmatmul.f32.gmra.mxu0 %v72
  %v160 = vpop.f32.mrf.mxu0
  %v161 = vadd.f32 %v65, %v160
  %162 = vmatmul.f32.gmra.mxu0 %v75
  %v163 = vpop.f32.mrf.mxu0
  %v164 = vadd.f32 %v65, %v163
  %165 = vmatmul.f32.gmra.mxu0 %v78
  %v166 = vpop.f32.mrf.mxu0
  %v167 = vadd.f32 %v65, %v166
  %168 = vmatmul.f32.gmra.mxu0 %v81
  %v169 = vpop.f32.mrf.mxu0
  %v170 = vadd.f32 %v65, %v169
  %171 = vmatmul.f32.gmra.mxu0 %v84
  %v172 = vpop.f32.mrf.mxu0
  %v173 = vadd.f32 %v65, %v172
  %174 = vmatmul.f32.gmra.mxu0 %v87
  %v175 = vpop.f32.mrf.mxu0
  %v176 = vadd.f32 %v65, %v175
  %177 = vmatmul.f32.gmra.mxu0 %v90
  %v178 = vpop.f32.mrf.mxu0
  %v179 = vadd.f32 %v65, %v178
  %180 = vmatmul.f32.gmra.mxu0 %v93
  %v181 = vpop.f32.mrf.mxu0
  %v182 = vadd.f32 %v65, %v181
  %183 = vmatmul.f32.gmra.mxu0 %v96
  %v184 = vpop.f32.mrf.mxu0
  %v185 = vadd.f32 %v65, %v184
  %186 = vmatmul.f32.gmra.mxu0 %v99
  %v187 = vpop.f32.mrf.mxu0
  %v188 = vadd.f32 %v65, %v187
  %189 = vmatmul.f32.gmra.mxu0 %v102
  %v190 = vpop.f32.mrf.mxu0
  %v191 = vadd.f32 %v65, %v190
  %192 = vmatmul.f32.gmra.mxu0 %v105
  %v193 = vpop.f32.mrf.mxu0
  %v194 = vadd.f32 %v65, %v193
  %195 = vmatmul.f32.gmra.mxu0 %v108
  %v196 = vpop.f32.mrf.mxu0
  %v197 = vadd.f32 %v65, %v196
  %198 = vmatmul.f32.gmra.mxu0 %v111
  %v199 = vpop.f32.mrf.mxu0
  %v200 = vadd.f32 %v65, %v199
  %201 = vmatmul.f32.gmra.mxu0 %v114
  %v202 = vpop.f32.mrf.mxu0
  %v203 = vadd.f32 %v65, %v202
  %204 = vmatmul.f32.gmra.mxu0 %v117
  %v205 = vpop.f32.mrf.mxu0
  %v206 = vadd.f32 %v65, %v205
  %207 = vmatmul.f32.gmra.mxu0 %v120
  %v208 = vpop.f32.mrf.mxu0
  %v209 = vadd.f32 %v65, %v208
  %210 = vmatmul.f32.gmra.mxu0 %v123
  %v211 = vpop.f32.mrf.mxu0
  %v212 = vadd.f32 %v65, %v211
  %213 = vmatmul.f32.gmra.mxu0 %v126
  %v214 = vpop.f32.mrf.mxu0
  %v215 = vadd.f32 %v65, %v214
  %216 = vmatmul.f32.gmra.mxu0 %v129
  %v217 = vpop.f32.mrf.mxu0
  %v218 = vadd.f32 %v65, %v217
  %219 = vmatmul.f32.gmra.mxu0 %v132
  %v220 = vpop.f32.mrf.mxu0
  %v221 = vadd.f32 %v65, %v220
  %222 = vmatmul.f32.gmra.mxu0 %v135
  %v223 = vpop.f32.mrf.mxu0
  %v224 = vadd.f32 %v65, %v223
  %225 = vmatmul.f32.gmra.mxu0 %v138
  %v226 = vpop.f32.mrf.mxu0
  %v227 = vadd.f32 %v65, %v226
  %228 = vdwg.mxu0
  %v229 = vmax.f32 %v158, 0.0
  %v230 = vmax.f32 %v161, 0.0
  %v231 = vmax.f32 %v164, 0.0
  %v232 = vmax.f32 %v167, 0.0
  %v233 = vmax.f32 %v170, 0.0
  %v234 = vmax.f32 %v173, 0.0
  %v235 = vmax.f32 %v176, 0.0
  %v236 = vmax.f32 %v179, 0.0
  %v237 = vmax.f32 %v182, 0.0
  %v238 = vmax.f32 %v185, 0.0
  %v239 = vmax.f32 %v188, 0.0
  %v240 = vmax.f32 %v191, 0.0
  %v241 = vmax.f32 %v194, 0.0
  %v242 = vmax.f32 %v197, 0.0
  %v243 = vmax.f32 %v200, 0.0
  %v244 = vmax.f32 %v203, 0.0
  %v245 = vmax.f32 %v206, 0.0
  %v246 = vmax.f32 %v209, 0.0
  %v247 = vmax.f32 %v212, 0.0
  %v248 = vmax.f32 %v215, 0.0
  %v249 = vmax.f32 %v218, 0.0
  %v250 = vmax.f32 %v221, 0.0
  %v251 = vmax.f32 %v224, 0.0
  %v252 = vmax.f32 %v227, 0.0
  %v253 = vld [vmem:[%s3] sm:$0xff]
  %v254 = vld [vmem:[%s3 + $0x8] sm:$0xff]
  %v255 = vld [vmem:[%s3 + $0x10] sm:$0xff]
  %v256 = vld [vmem:[%s3 + $0x18] sm:$0xff]
  %v257 = vld [vmem:[%s3 + $0x20] sm:$0xff]
  %v258 = vld [vmem:[%s3 + $0x28] sm:$0xff]
  %v259 = vld [vmem:[%s3 + $0x30] sm:$0xff]
  %v260 = vld [vmem:[%s3 + $0x38] sm:$0xff]
  %v261 = vld [vmem:[%s3 + $0x40] sm:$0xff]
  %v262 = vld [vmem:[%s3 + $0x48] sm:$0xff]
  %v263 = vld [vmem:[%s3 + $0x50] sm:$0xff]
  %v264 = vld [vmem:[%s3 + $0x58] sm:$0xff]
  %v265 = vld [vmem:[%s3 + $0x60] sm:$0xff]
  %v266 = vld [vmem:[%s3 + $0x68] sm:$0xff]
  %v267 = vld [vmem:[%s3 + $0x70] sm:$0xff]
  %v268 = vld [vmem:[%s3 + $0x78] sm:$0xff]
  %v269 = vld [vmem:[%s4] sm:$0x1]
  %v271 = vperm.slane %v269, 0
  %273 = vmatpush.msra.mxu0 %v268
  %274 = vmatpush.msra.mxu0 %v267
  %275 = vmatpush.msra.mxu0 %v266
  %276 = vmatpush.msra.mxu0 %v265
  %277 = vmatpush.msra.mxu0 %v264
  %278 = vmatpush.msra.mxu0 %v263
  %279 = vmatpush.msra.mxu0 %v262
  %280 = vmatpush.msra.mxu0 %v261
  %281 = vmatpush.msra.mxu0 %v260
  %282 = vmatpush.msra.mxu0 %v259
  %283 = vmatpush.msra.mxu0 %v258
  %284 = vmatpush.msra.mxu0 %v257
  %285 = vmatpush.msra.mxu0 %v256
  %286 = vmatpush.msra.mxu0 %v255
  %287 = vmatpush.msra.mxu0 %v254
  %288 = vmatpush.msra.mxu0 %v253
  %289 = vmatmul.f32.gmra.mxu0 %v229
  %v290 = vpop.f32.mrf.mxu0
  %v291 = vadd.f32 %v271, %v290
  %292 = vmatmul.f32.gmra.mxu0 %v230
  %v293 = vpop.f32.mrf.mxu0
  %v294 = vadd.f32 %v271, %v293
  %295 = vmatmul.f32.gmra.mxu0 %v231
  %v296 = vpop.f32.mrf.mxu0
  %v297 = vadd.f32 %v271, %v296
  %298 = vmatmul.f32.gmra.mxu0 %v232
  %v299 = vpop.f32.mrf.mxu0
  %v300 = vadd.f32 %v271, %v299
  %301 = vmatmul.f32.gmra.mxu0 %v233
  %v302 = vpop.f32.mrf.mxu0
  %v303 = vadd.f32 %v271, %v302
  %304 = vmatmul.f32.gmra.mxu0 %v234
  %v305 = vpop.f32.mrf.mxu0
  %v306 = vadd.f32 %v271, %v305
  %307 = vmatmul.f32.gmra.mxu0 %v235
  %v308 = vpop.f32.mrf.mxu0
  %v309 = vadd.f32 %v271, %v308
  %310 = vmatmul.f32.gmra.mxu0 %v236
  %v311 = vpop.f32.mrf.mxu0
  %v312 = vadd.f32 %v271, %v311
  %313 = vmatmul.f32.gmra.mxu0 %v237
  %v314 = vpop.f32.mrf.mxu0
  %v315 = vadd.f32 %v271, %v314
  %316 = vmatmul.f32.gmra.mxu0 %v238
  %v317 = vpop.f32.mrf.mxu0
  %v318 = vadd.f32 %v271, %v317
  %319 = vmatmul.f32.gmra.mxu0 %v239
  %v320 = vpop.f32.mrf.mxu0
  %v321 = vadd.f32 %v271, %v320
  %322 = vmatmul.f32.gmra.mxu0 %v240
  %v323 = vpop.f32.mrf.mxu0
  %v324 = vadd.f32 %v271, %v323
  %325 = vmatmul.f32.gmra.mxu0 %v241
  %v326 = vpop.f32.mrf.mxu0
  %v327 = vadd.f32 %v271, %v326
  %328 = vmatmul.f32.gmra.mxu0 %v242
  %v329 = vpop.f32.mrf.mxu0
  %v330 = vadd.f32 %v271, %v329
  %331 = vmatmul.f32.gmra.mxu0 %v243
  %v332 = vpop.f32.mrf.mxu0
  %v333 = vadd.f32 %v271, %v332
  %334 = vmatmul.f32.gmra.mxu0 %v244
  %v335 = vpop.f32.mrf.mxu0
  %v336 = vadd.f32 %v271, %v335
  %337 = vmatmul.f32.gmra.mxu0 %v245
  %v338 = vpop.f32.mrf.mxu0
  %v339 = vadd.f32 %v271, %v338
  %340 = vmatmul.f32.gmra.mxu0 %v246
  %v341 = vpop.f32.mrf.mxu0
  %v342 = vadd.f32 %v271, %v341
  %343 = vmatmul.f32.gmra.mxu0 %v247
  %v344 = vpop.f32.mrf.mxu0
  %v345 = vadd.f32 %v271, %v344
  %346 = vmatmul.f32.gmra.mxu0 %v248
  %v347 = vpop.f32.mrf.mxu0
  %v348 = vadd.f32 %v271, %v347
  %349 = vmatmul.f32.gmra.mxu0 %v249
  %v350 = vpop.f32.mrf.mxu0
  %v351 = vadd.f32 %v271, %v350
  %352 = vmatmul.f32.gmra.mxu0 %v250
  %v353 = vpop.f32.mrf.mxu0
  %v354 = vadd.f32 %v271, %v353
  %355 = vmatmul.f32.gmra.mxu0 %v251
  %v356 = vpop.f32.mrf.mxu0
  %v357 = vadd.f32 %v271, %v356
  %358 = vmatmul.f32.gmra.mxu0 %v252
  %v359 = vpop.f32.mrf.mxu0
  %v360 = vadd.f32 %v271, %v359
  %361 = vdwg.mxu0
  %v362 = vmax.f32 %v291, 0.0
  %v363 = vmax.f32 %v294, 0.0
  %v364 = vmax.f32 %v297, 0.0
  %v365 = vmax.f32 %v300, 0.0
  %v366 = vmax.f32 %v303, 0.0
  %v367 = vmax.f32 %v306, 0.0
  %v368 = vmax.f32 %v309, 0.0
  %v369 = vmax.f32 %v312, 0.0
  %v370 = vmax.f32 %v315, 0.0
  %v371 = vmax.f32 %v318, 0.0
  %v372 = vmax.f32 %v321, 0.0
  %v373 = vmax.f32 %v324, 0.0
  %v374 = vmax.f32 %v327, 0.0
  %v375 = vmax.f32 %v330, 0.0
  %v376 = vmax.f32 %v333, 0.0
  %v377 = vmax.f32 %v336, 0.0
  %v378 = vmax.f32 %v339, 0.0
  %v379 = vmax.f32 %v342, 0.0
  %v380 = vmax.f32 %v345, 0.0
  %v381 = vmax.f32 %v348, 0.0
  %v382 = vmax.f32 %v351, 0.0
  %v383 = vmax.f32 %v354, 0.0
  %v384 = vmax.f32 %v357, 0.0
  %v385 = vmax.f32 %v360, 0.0
  %v386 = vld [vmem:[%s5] sm:$0xff]
  %v387 = vld [vmem:[%s5 + $0x8] sm:$0xff]
  %v388 = vld [vmem:[%s5 + $0x10] sm:$0xff]
  %v389 = vld [vmem:[%s5 + $0x18] sm:$0xff]
  %v390 = vld [vmem:[%s5 + $0x20] sm:$0xff]
  %v391 = vld [vmem:[%s5 + $0x28] sm:$0xff]
  %v392 = vld [vmem:[%s5 + $0x30] sm:$0xff]
  %v393 = vld [vmem:[%s5 + $0x38] sm:$0xff]
  %v394 = vld [vmem:[%s5 + $0x40] sm:$0xff]
  %v395 = vld [vmem:[%s5 + $0x48] sm:$0xff]
  %v396 = vld [vmem:[%s5 + $0x50] sm:$0xff]
  %v397 = vld [vmem:[%s5 + $0x58] sm:$0xff]
  %v398 = vld [vmem:[%s5 + $0x60] sm:$0xff]
  %v399 = vld [vmem:[%s5 + $0x68] sm:$0xff]
  %v400 = vld [vmem:[%s5 + $0x70] sm:$0xff]
  %v401 = vld [vmem:[%s5 + $0x78] sm:$0xff]
  %v402 = vld [vmem:[%s6] sm:$0x1]
  %v404 = vperm.slane %v402, 0
  %406 = vmatpush.msra.mxu0 %v401
  %407 = vmatpush.msra.mxu0 %v400
  %408 = vmatpush.msra.mxu0 %v399
  %409 = vmatpush.msra.mxu0 %v398
  %410 = vmatpush.msra.mxu0 %v397
  %411 = vmatpush.msra.mxu0 %v396
  %412 = vmatpush.msra.mxu0 %v395
  %413 = vmatpush.msra.mxu0 %v394
  %414 = vmatpush.msra.mxu0 %v393
  %415 = vmatpush.msra.mxu0 %v392
  %416 = vmatpush.msra.mxu0 %v391
  %417 = vmatpush.msra.mxu0 %v390
  %418 = vmatpush.msra.mxu0 %v389
  %419 = vmatpush.msra.mxu0 %v388
  %420 = vmatpush.msra.mxu0 %v387
  %421 = vmatpush.msra.mxu0 %v386
  %422 = vmatmul.f32.gmra.mxu0 %v362
  %v423 = vpop.f32.mrf.mxu0
  %v424 = vadd.f32 %v404, %v423
  %425 = vmatmul.f32.gmra.mxu0 %v363
  %v426 = vpop.f32.mrf.mxu0
  %v427 = vadd.f32 %v404, %v426
  %428 = vmatmul.f32.gmra.mxu0 %v364
  %v429 = vpop.f32.mrf.mxu0
  %v430 = vadd.f32 %v404, %v429
  %431 = vmatmul.f32.gmra.mxu0 %v365
  %v432 = vpop.f32.mrf.mxu0
  %v433 = vadd.f32 %v404, %v432
  %434 = vmatmul.f32.gmra.mxu0 %v366
  %v435 = vpop.f32.mrf.mxu0
  %v436 = vadd.f32 %v404, %v435
  %437 = vmatmul.f32.gmra.mxu0 %v367
  %v438 = vpop.f32.mrf.mxu0
  %v439 = vadd.f32 %v404, %v438
  %440 = vmatmul.f32.gmra.mxu0 %v368
  %v441 = vpop.f32.mrf.mxu0
  %v442 = vadd.f32 %v404, %v441
  %443 = vmatmul.f32.gmra.mxu0 %v369
  %v444 = vpop.f32.mrf.mxu0
  %v445 = vadd.f32 %v404, %v444
  %446 = vmatmul.f32.gmra.mxu0 %v370
  %v447 = vpop.f32.mrf.mxu0
  %v448 = vadd.f32 %v404, %v447
  %449 = vmatmul.f32.gmra.mxu0 %v371
  %v450 = vpop.f32.mrf.mxu0
  %v451 = vadd.f32 %v404, %v450
  %452 = vmatmul.f32.gmra.mxu0 %v372
  %v453 = vpop.f32.mrf.mxu0
  %v454 = vadd.f32 %v404, %v453
  %455 = vmatmul.f32.gmra.mxu0 %v373
  %v456 = vpop.f32.mrf.mxu0
  %v457 = vadd.f32 %v404, %v456
  %458 = vmatmul.f32.gmra.mxu0 %v374
  %v459 = vpop.f32.mrf.mxu0
  %v460 = vadd.f32 %v404, %v459
  %461 = vmatmul.f32.gmra.mxu0 %v375
  %v462 = vpop.f32.mrf.mxu0
  %v463 = vadd.f32 %v404, %v462
  %464 = vmatmul.f32.gmra.mxu0 %v376
  %v465 = vpop.f32.mrf.mxu0
  %v466 = vadd.f32 %v404, %v465
  %467 = vmatmul.f32.gmra.mxu0 %v377
  %v468 = vpop.f32.mrf.mxu0
  %v469 = vadd.f32 %v404, %v468
  %470 = vmatmul.f32.gmra.mxu0 %v378
  %v471 = vpop.f32.mrf.mxu0
  %v472 = vadd.f32 %v404, %v471
  %473 = vmatmul.f32.gmra.mxu0 %v379
  %v474 = vpop.f32.mrf.mxu0
  %v475 = vadd.f32 %v404, %v474
  %476 = vmatmul.f32.gmra.mxu0 %v380
  %v477 = vpop.f32.mrf.mxu0
  %v478 = vadd.f32 %v404, %v477
  %479 = vmatmul.f32.gmra.mxu0 %v381
  %v480 = vpop.f32.mrf.mxu0
  %v481 = vadd.f32 %v404, %v480
  %482 = vmatmul.f32.gmra.mxu0 %v382
  %v483 = vpop.f32.mrf.mxu0
  %v484 = vadd.f32 %v404, %v483
  %485 = vmatmul.f32.gmra.mxu0 %v383
  %v486 = vpop.f32.mrf.mxu0
  %v487 = vadd.f32 %v404, %v486
  %488 = vmatmul.f32.gmra.mxu0 %v384
  %v489 = vpop.f32.mrf.mxu0
  %v490 = vadd.f32 %v404, %v489
  %491 = vmatmul.f32.gmra.mxu0 %v385
  %v492 = vpop.f32.mrf.mxu0
  %v493 = vadd.f32 %v404, %v492
  %494 = vdwg.mxu0
  %v495 = vmax.f32 %v424, 0.0
  %v496 = vmax.f32 %v427, 0.0
  %v497 = vmax.f32 %v430, 0.0
  %v498 = vmax.f32 %v433, 0.0
  %v499 = vmax.f32 %v436, 0.0
  %v500 = vmax.f32 %v439, 0.0
  %v501 = vmax.f32 %v442, 0.0
  %v502 = vmax.f32 %v445, 0.0
  %v503 = vmax.f32 %v448, 0.0
  %v504 = vmax.f32 %v451, 0.0
  %v505 = vmax.f32 %v454, 0.0
  %v506 = vmax.f32 %v457, 0.0
  %v507 = vmax.f32 %v460, 0.0
  %v508 = vmax.f32 %v463, 0.0
  %v509 = vmax.f32 %v466, 0.0
  %v510 = vmax.f32 %v469, 0.0
  %v511 = vmax.f32 %v472, 0.0
  %v512 = vmax.f32 %v475, 0.0
  %v513 = vmax.f32 %v478, 0.0
  %v514 = vmax.f32 %v481, 0.0
  %v515 = vmax.f32 %v484, 0.0
  %v516 = vmax.f32 %v487, 0.0
  %v517 = vmax.f32 %v490, 0.0
  %v518 = vmax.f32 %v493, 0.0
  %v519 = vld [vmem:[%s7] sm:$0xff]
  %v520 = vld [vmem:[%s7 + $0x8] sm:$0xff]
  %v521 = vld [vmem:[%s7 + $0x10] sm:$0xff]
  %v522 = vld [vmem:[%s7 + $0x18] sm:$0xff]
  %v523 = vld [vmem:[%s7 + $0x20] sm:$0xff]
  %v524 = vld [vmem:[%s7 + $0x28] sm:$0xff]
  %v525 = vld [vmem:[%s7 + $0x30] sm:$0xff]
  %v526 = vld [vmem:[%s7 + $0x38] sm:$0xff]
  %v527 = vld [vmem:[%s7 + $0x40] sm:$0xff]
  %v528 = vld [vmem:[%s7 + $0x48] sm:$0xff]
  %v529 = vld [vmem:[%s7 + $0x50] sm:$0xff]
  %v530 = vld [vmem:[%s7 + $0x58] sm:$0xff]
  %v531 = vld [vmem:[%s7 + $0x60] sm:$0xff]
  %v532 = vld [vmem:[%s7 + $0x68] sm:$0xff]
  %v533 = vld [vmem:[%s7 + $0x70] sm:$0xff]
  %v534 = vld [vmem:[%s7 + $0x78] sm:$0xff]
  %v535 = vld [vmem:[%s8] sm:$0x1]
  %v537 = vperm.slane %v535, 0
  %539 = vmatpush.msra.mxu0 %v534
  %540 = vmatpush.msra.mxu0 %v533
  %541 = vmatpush.msra.mxu0 %v532
  %542 = vmatpush.msra.mxu0 %v531
  %543 = vmatpush.msra.mxu0 %v530
  %544 = vmatpush.msra.mxu0 %v529
  %545 = vmatpush.msra.mxu0 %v528
  %546 = vmatpush.msra.mxu0 %v527
  %547 = vmatpush.msra.mxu0 %v526
  %548 = vmatpush.msra.mxu0 %v525
  %549 = vmatpush.msra.mxu0 %v524
  %550 = vmatpush.msra.mxu0 %v523
  %551 = vmatpush.msra.mxu0 %v522
  %552 = vmatpush.msra.mxu0 %v521
  %553 = vmatpush.msra.mxu0 %v520
  %554 = vmatpush.msra.mxu0 %v519
  %555 = vmatmul.f32.gmra.mxu0 %v495
  %v556 = vpop.f32.mrf.mxu0
  %v557 = vadd.f32 %v537, %v556
  %558 = vmatmul.f32.gmra.mxu0 %v496
  %v559 = vpop.f32.mrf.mxu0
  %v560 = vadd.f32 %v537, %v559
  %561 = vmatmul.f32.gmra.mxu0 %v497
  %v562 = vpop.f32.mrf.mxu0
  %v563 = vadd.f32 %v537, %v562
  %564 = vmatmul.f32.gmra.mxu0 %v498
  %v565 = vpop.f32.mrf.mxu0
  %v566 = vadd.f32 %v537, %v565
  %567 = vmatmul.f32.gmra.mxu0 %v499
  %v568 = vpop.f32.mrf.mxu0
  %v569 = vadd.f32 %v537, %v568
  %570 = vmatmul.f32.gmra.mxu0 %v500
  %v571 = vpop.f32.mrf.mxu0
  %v572 = vadd.f32 %v537, %v571
  %573 = vmatmul.f32.gmra.mxu0 %v501
  %v574 = vpop.f32.mrf.mxu0
  %v575 = vadd.f32 %v537, %v574
  %576 = vmatmul.f32.gmra.mxu0 %v502
  %v577 = vpop.f32.mrf.mxu0
  %v578 = vadd.f32 %v537, %v577
  %579 = vmatmul.f32.gmra.mxu0 %v503
  %v580 = vpop.f32.mrf.mxu0
  %v581 = vadd.f32 %v537, %v580
  %582 = vmatmul.f32.gmra.mxu0 %v504
  %v583 = vpop.f32.mrf.mxu0
  %v584 = vadd.f32 %v537, %v583
  %585 = vmatmul.f32.gmra.mxu0 %v505
  %v586 = vpop.f32.mrf.mxu0
  %v587 = vadd.f32 %v537, %v586
  %588 = vmatmul.f32.gmra.mxu0 %v506
  %v589 = vpop.f32.mrf.mxu0
  %v590 = vadd.f32 %v537, %v589
  %591 = vmatmul.f32.gmra.mxu0 %v507
  %v592 = vpop.f32.mrf.mxu0
  %v593 = vadd.f32 %v537, %v592
  %594 = vmatmul.f32.gmra.mxu0 %v508
  %v595 = vpop.f32.mrf.mxu0
  %v596 = vadd.f32 %v537, %v595
  %597 = vmatmul.f32.gmra.mxu0 %v509
  %v598 = vpop.f32.mrf.mxu0
  %v599 = vadd.f32 %v537, %v598
  %600 = vmatmul.f32.gmra.mxu0 %v510
  %v601 = vpop.f32.mrf.mxu0
  %v602 = vadd.f32 %v537, %v601
  %603 = vmatmul.f32.gmra.mxu0 %v511
  %v604 = vpop.f32.mrf.mxu0
  %v605 = vadd.f32 %v537, %v604
  %606 = vmatmul.f32.gmra.mxu0 %v512
  %v607 = vpop.f32.mrf.mxu0
  %v608 = vadd.f32 %v537, %v607
  %609 = vmatmul.f32.gmra.mxu0 %v513
  %v610 = vpop.f32.mrf.mxu0
  %v611 = vadd.f32 %v537, %v610
  %612 = vmatmul.f32.gmra.mxu0 %v514
  %v613 = vpop.f32.mrf.mxu0
  %v614 = vadd.f32 %v537, %v613
  %615 = vmatmul.f32.gmra.mxu0 %v515
  %v616 = vpop.f32.mrf.mxu0
  %v617 = vadd.f32 %v537, %v616
  %618 = vmatmul.f32.gmra.mxu0 %v516
  %v619 = vpop.f32.mrf.mxu0
  %v620 = vadd.f32 %v537, %v619
  %621 = vmatmul.f32.gmra.mxu0 %v517
  %v622 = vpop.f32.mrf.mxu0
  %v623 = vadd.f32 %v537, %v622
  %624 = vmatmul.f32.gmra.mxu0 %v518
  %v625 = vpop.f32.mrf.mxu0
  %v626 = vadd.f32 %v537, %v625
  %627 = vdwg.mxu0
  %v628 = vld [vmem:[%s9] sm:$0xff]
  %v629 = vld [vmem:[%s9 + $0x8] sm:$0xff]
  %v630 = vld [vmem:[%s9 + $0x10] sm:$0xff]
  %v631 = vld [vmem:[%s9 + $0x18] sm:$0xff]
  %v632 = vld [vmem:[%s9 + $0x20] sm:$0xff]
  %v633 = vld [vmem:[%s9 + $0x28] sm:$0xff]
  %v634 = vld [vmem:[%s9 + $0x30] sm:$0xff]
  %v635 = vld [vmem:[%s9 + $0x38] sm:$0xff]
  %v636 = vld [vmem:[%s9 + $0x40] sm:$0xff]
  %v637 = vld [vmem:[%s9 + $0x48] sm:$0xff]
  %v638 = vld [vmem:[%s9 + $0x50] sm:$0xff]
  %v639 = vld [vmem:[%s9 + $0x58] sm:$0xff]
  %v640 = vld [vmem:[%s9 + $0x60] sm:$0xff]
  %v641 = vld [vmem:[%s9 + $0x68] sm:$0xff]
  %v642 = vld [vmem:[%s9 + $0x70] sm:$0xff]
  %v643 = vld [vmem:[%s9 + $0x78] sm:$0xff]
  %v644 = vld [vmem:[%s9 + $0x80] sm:$0xff]
  %v645 = vld [vmem:[%s9 + $0x88] sm:$0xff]
  %v646 = vld [vmem:[%s9 + $0x90] sm:$0xff]
  %v647 = vld [vmem:[%s9 + $0x98] sm:$0xff]
  %v648 = vld [vmem:[%s9 + $0xa0] sm:$0xff]
  %v649 = vld [vmem:[%s9 + $0xa8] sm:$0xff]
  %v650 = vld [vmem:[%s9 + $0xb0] sm:$0xff]
  %v651 = vld [vmem:[%s9 + $0xb8] sm:$0xff]
  %v652 = vmul.f32 %v557, %v628
  %v653 = vmul.f32 %v560, %v629
  %v654 = vmul.f32 %v563, %v630
  %v655 = vmul.f32 %v566, %v631
  %v656 = vmul.f32 %v569, %v632
  %v657 = vmul.f32 %v572, %v633
  %v658 = vmul.f32 %v575, %v634
  %v659 = vmul.f32 %v578, %v635
  %v660 = vmul.f32 %v581, %v636
  %v661 = vmul.f32 %v584, %v637
  %v662 = vmul.f32 %v587, %v638
  %v663 = vmul.f32 %v590, %v639
  %v664 = vmul.f32 %v593, %v640
  %v665 = vmul.f32 %v596, %v641
  %v666 = vmul.f32 %v599, %v642
  %v667 = vmul.f32 %v602, %v643
  %v668 = vmul.f32 %v605, %v644
  %v669 = vmul.f32 %v608, %v645
  %v670 = vmul.f32 %v611, %v646
  %v671 = vmul.f32 %v614, %v647
  %v672 = vmul.f32 %v617, %v648
  %v673 = vmul.f32 %v620, %v649
  %v674 = vmul.f32 %v623, %v650
  %v675 = vmul.f32 %v626, %v651
  %v676 = vld [vmem:[%s10] sm:$0xff]
  %v677 = vld [vmem:[%s10 + $0x8] sm:$0xff]
  %v678 = vld [vmem:[%s10 + $0x10] sm:$0xff]
  %v679 = vld [vmem:[%s10 + $0x18] sm:$0xff]
  %v680 = vld [vmem:[%s10 + $0x20] sm:$0xff]
  %v681 = vld [vmem:[%s10 + $0x28] sm:$0xff]
  %v682 = vld [vmem:[%s10 + $0x30] sm:$0xff]
  %v683 = vld [vmem:[%s10 + $0x38] sm:$0xff]
  %vm684 = vcmask 523264
  %v686 = vsel %vm684, %v677, 0
  %v689 = vsel %vm684, %v679, 0
  %v692 = vsel %vm684, %v681, 0
  %v695 = vsel %vm684, %v683, 0
  %697 = vmatpush.msra.mxu0 %v667
  %698 = vmatpush.msra.mxu0 %v666
  %699 = vmatpush.msra.mxu0 %v665
  %700 = vmatpush.msra.mxu0 %v664
  %701 = vmatpush.msra.mxu0 %v663
  %702 = vmatpush.msra.mxu0 %v662
  %703 = vmatpush.msra.mxu0 %v661
  %704 = vmatpush.msra.mxu0 %v660
  %705 = vmatpush.msra.mxu0 %v659
  %706 = vmatpush.msra.mxu0 %v658
  %707 = vmatpush.msra.mxu0 %v657
  %708 = vmatpush.msra.mxu0 %v656
  %709 = vmatpush.msra.mxu0 %v655
  %710 = vmatpush.msra.mxu0 %v654
  %711 = vmatpush.msra.mxu0 %v653
  %712 = vmatpush.msra.mxu0 %v652
  %713 = vmatmul.f32.gmra.mxu0 %v676
  %v714 = vpop.f32.mrf.mxu0
  %v715 = vadd.f32 0.0, %v714
  %716 = vmatmul.f32.gmra.mxu0 %v678
  %v717 = vpop.f32.mrf.mxu0
  %v718 = vadd.f32 0.0, %v717
  %719 = vmatmul.f32.gmra.mxu0 %v680
  %v720 = vpop.f32.mrf.mxu0
  %v721 = vadd.f32 0.0, %v720
  %722 = vmatmul.f32.gmra.mxu0 %v682
  %v723 = vpop.f32.mrf.mxu0
  %v724 = vadd.f32 0.0, %v723
  %725 = vdwg.mxu0
  %726 = vmatpush.msra.mxu0 0.0
  %727 = vmatpush.msra.mxu0 0.0
  %728 = vmatpush.msra.mxu0 0.0
  %729 = vmatpush.msra.mxu0 0.0
  %730 = vmatpush.msra.mxu0 0.0
  %731 = vmatpush.msra.mxu0 0.0
  %732 = vmatpush.msra.mxu0 0.0
  %733 = vmatpush.msra.mxu0 0.0
  %734 = vmatpush.msra.mxu0 %v675
  %735 = vmatpush.msra.mxu0 %v674
  %736 = vmatpush.msra.mxu0 %v673
  %737 = vmatpush.msra.mxu0 %v672
  %738 = vmatpush.msra.mxu0 %v671
  %739 = vmatpush.msra.mxu0 %v670
  %740 = vmatpush.msra.mxu0 %v669
  %741 = vmatpush.msra.mxu0 %v668
  %742 = vmatmul.f32.gmra.mxu0 %v686
  %v743 = vpop.f32.mrf.mxu0
  %v744 = vadd.f32 %v715, %v743
  %745 = vmatmul.f32.gmra.mxu0 %v689
  %v746 = vpop.f32.mrf.mxu0
  %v747 = vadd.f32 %v718, %v746
  %748 = vmatmul.f32.gmra.mxu0 %v692
  %v749 = vpop.f32.mrf.mxu0
  %v750 = vadd.f32 %v721, %v749
  %751 = vmatmul.f32.gmra.mxu0 %v695
  %v752 = vpop.f32.mrf.mxu0
  %v753 = vadd.f32 %v724, %v752
  %754 = vdwg.mxu0
  %755 = vst [vmem:[%s11] sm:$0xff] %v744
  %756 = vst [vmem:[%s11 + $0x8] sm:$0xff] %v747
  %757 = vst [vmem:[%s11 + $0x10] sm:$0xff] %v750
  %758 = vst [vmem:[%s11 + $0x18] sm:$0xff] %v753
  // Predicated region
  $region46: #{forward.1} parent=0 // pred_check
    _
  $region47: #{forward.1} parent=0 // pred_check_branch
    %760 = sbr.rel (0) target = $region49
  $region48: #{forward.1} parent=0 // pred_region
    _
  $region49: #{forward.1} parent=0 // pred_fallthru
    _
  // Predicated region
  $region50: #{forward.1} parent=0 // pred_check
    _
  $region51: #{forward.1} parent=0 // pred_check_branch
    %762 = sbr.rel (0) target = $region53
  $region52: #{forward.1} parent=0 // pred_region
    _
  $region53: #{forward.1} parent=0 // pred_fallthru
    _

</llo_original>
